<compile_context>
chip_gen: v7x
topology: tpu7x:2x2x1
jax: 0.10.0
libtpu: 0.0.40
codegen_flags: <defaults>
</compile_context>

<pallas_src>
import functools
import math

import jax
import jax.numpy as jnp
from jax.experimental import pallas as pl
from jax.experimental.pallas import tpu as pltpu


def _attention_kernel(x_ref, w_ref, b_ref, u_ref, o_ref, *, precision):
    # x_ref: (TB, T, D) [f32 or bf16], w_ref: (D, D) [same dtype as x],
    # b_ref: (1, D) f32, u_ref: (D, 1) f32, o_ref: (TB, D).
    x = x_ref[...]
    TB, T, D = x.shape
    w = w_ref[...]
    b = b_ref[...]
    u = u_ref[...]

    # Main GEMM on the MXU, f32 accumulation: (TB*T, D) @ (D, D).
    # T % 8 == 0 keeps this reshape a layout-preserving view.
    x2 = x.reshape(TB * T, D)
    h = jnp.tanh(
        jnp.dot(x2, w, preferred_element_type=jnp.float32, precision=precision) + b
    )                                                        # (TB*T, D) f32

    # Attention logits h @ u, also on the MXU (frees VPU/XLU slots).
    tmp = jnp.dot(h, u, preferred_element_type=jnp.float32,
                  precision=precision)                       # (TB*T, 1)
    tmp = tmp.reshape(TB, T, 1)                              # small, aligned

    # Mask from the first feature channel (matches the PyTorch module).
    mask = x[:, :, 0:1] != 0                                 # (TB, T, 1)
    masked = jnp.where(mask, tmp, jnp.float32(-1e32))        # f32

    # Numerically stable softmax over time, entirely in f32.
    m = jnp.max(masked, axis=1, keepdims=True)               # (TB, 1, 1)
    e = jnp.exp(masked - m)                                  # (TB, T, 1)
    denom = jnp.sum(e, axis=1, keepdims=True)                # (TB, 1, 1)
    # Exact divide for tight agreement with the reference; swap for
    # pl.reciprocal(denom, approx=True) if ~1e-4 relative error is OK.
    alpha = e / denom                                        # (TB, T, 1)

    out = jnp.sum(x.astype(jnp.float32) * alpha, axis=1)     # (TB, D)
    o_ref[...] = out.astype(o_ref.dtype)


def _round_up(v, m):
    return ((v + m - 1) // m) * m


def _invariant_spec(shape):
    """BlockSpec for a grid-invariant operand: constant index map, 1 buffer."""
    imap = lambda i, _s=shape: (0,) * len(_s)
    try:
        return pl.BlockSpec(shape, imap, pipeline_mode=pl.Buffered(1))
    except Exception:  # older JAX without pipeline_mode / Buffered
        return pl.BlockSpec(shape, imap)


def attention_layer(x, w_t, b, u, *, block_b=None, compute_dtype=None):
    """x: (B, T, D); w_t: (D, D) = fc.weight.T; b: (D,); u: (D,) -> (B, D)."""
    B, T, D = x.shape

    if compute_dtype is not None and x.dtype != compute_dtype:
        # bf16 inputs halve HBM traffic / double MXU rate; accumulation,
        # bias, masking and the softmax chain stay in f32 inside the kernel.
        x = x.astype(compute_dtype)
        w_t = w_t.astype(compute_dtype)

    b2 = b.reshape(1, D).astype(jnp.float32)
    u2 = u.reshape(D, 1).astype(jnp.float32)

    x_isz = jnp.dtype(x.dtype).itemsize
    w_isz = jnp.dtype(w_t.dtype).itemsize
    o_isz = x_isz

    # Per-generation VMEM budget (v5e/v6e: 128 MiB, v7x: 64 MiB per TC).
    try:
        vmem_cap = int(pltpu.get_tpu_info().vmem_capacity_bytes)
    except Exception:
        vmem_cap = 64 * 1024 * 1024       # v7x floor -> safe on every gen
    budget = (3 * vmem_cap) // 4          # headroom for compiler temps

    # VMEM footprint model: single-buffered W + b/u, double-buffered x/out
    # blocks, plus the f32 intermediates (h and the x*alpha product).
    weight_bytes = D * D * w_isz + 2 * 2 * D * 4
    per_row = T * D * (2 * x_isz + 2 * 4) + 2 * D * o_isz + 16 * T * 4

    if block_b is not None:
        tb = max(8, _round_up(int(block_b), 8))
    elif B < 8:
        tb = B                            # single full-array block
    else:
        avail = max(budget - weight_bytes, 8 * per_row)
        tb = max(8, avail // per_row)
        # Keep >= 2 grid steps so v7x's two TensorCores both get work.
        tb = min(tb, _round_up(pl.cdiv(B, 2), 8))
        # Align TB*T to the 256-wide MXU M dim (v6e/v7x) when affordable.
        m_need = 256 // math.gcd(256, T)
        m_align = 8 * m_need // math.gcd(8, m_need)
        if tb >= m_align:
            tb = (tb // m_align) * m_align
        tb = max(8, (tb // 8) * 8)

    grid = (pl.cdiv(B, tb),)

    est = weight_bytes + tb * per_row
    vmem_limit = int(min(budget, max(32 * 1024 * 1024, 2 * est)))

    precision = (jax.lax.Precision.HIGHEST
                 if x.dtype == jnp.float32 else jax.lax.Precision.DEFAULT)
    kernel = functools.partial(_attention_kernel, precision=precision)

    return pl.pallas_call(
        kernel,
        out_shape=jax.ShapeDtypeStruct((B, D), x.dtype),
        grid=grid,
        in_specs=[
            pl.BlockSpec((tb, T, D), lambda i: (i, 0, 0)),   # x: TB rows/step
            _invariant_spec((D, D)),                         # W^T (shared)
            _invariant_spec((1, D)),                         # bias (shared)
            _invariant_spec((D, 1)),                         # u    (shared)
        ],
        out_specs=pl.BlockSpec((tb, D), lambda i: (i, 0)),
        compiler_params=pltpu.CompilerParams(
            dimension_semantics=("parallel",),
            vmem_limit_bytes=vmem_limit,
        ),
    )(x, w_t, b2, u2)


def attention_layer_ref(x, w_t, b, u, *, precision=jax.lax.Precision.HIGHEST):
    """Pure-JAX reference mirroring the PyTorch forward (f32 math)."""
    mask = (x != 0)[:, :, 0]
    xf = x.astype(jnp.float32)
    wf = w_t.astype(jnp.float32)
    uf = u.astype(jnp.float32)
    h = jnp.tanh(jnp.einsum("btd,de->bte", xf, wf, precision=precision) + b)
    tmp = jnp.einsum("btd,d->bt", h, uf, precision=precision)
    masked = jnp.where(mask, tmp, jnp.float32(-1e32))
    alpha = jax.nn.softmax(masked, axis=1)[..., None]
    return jnp.sum(xf * alpha, axis=1)


if __name__ == "__main__":
    key = jax.random.PRNGKey(0)
    kx, ku, kw, kb, kx2 = jax.random.split(key, 5)

    B, T, D = 2, 8, 32
    x = jax.random.normal(kx, (B, T, D), dtype=jnp.float32)
    # Emulate padded sequence: zero the last 3 timesteps of batch 1
    # (mask is derived from x[:, :, 0] != 0, so they get masked out).
    x = x.at[1, T - 3:, :].set(0.0)

    u = jax.random.normal(ku, (D,), dtype=jnp.float32)           # self.u
    w = jax.random.normal(kw, (D, D), dtype=jnp.float32) * 0.1   # fc.weight
    b = jax.random.normal(kb, (D,), dtype=jnp.float32) * 0.1     # fc.bias
    w_t = w.T

    tol = 5e-3

    # 1) Tiny batch: single full-array block.
    out = jax.block_until_ready(attention_layer(x, w_t, b, u))
    ref = attention_layer_ref(x, w_t, b, u)
    assert out.shape == (B, D)
    assert jnp.allclose(out, ref, atol=tol, rtol=tol), "mismatch (single block)"

    # 2) Multi-step grid with a ragged last block (B % TB != 0, no host pad).
    B2 = 20
    x2 = jax.random.normal(kx2, (B2, T, D), dtype=jnp.float32)
    x2 = x2.at[3, T - 5:, :].set(0.0)
    ref2 = attention_layer_ref(x2, w_t, b, u)

    out2 = jax.block_until_ready(attention_layer(x2, w_t, b, u))
    assert out2.shape == (B2, D)
    assert jnp.allclose(out2, ref2, atol=tol, rtol=tol), "mismatch (auto tile)"

    # 3) Explicit smaller tile: grid of 3 blocks, ragged tail of 4 rows.
    out3 = jax.block_until_ready(attention_layer(x2, w_t, b, u, block_b=8))
    assert jnp.allclose(out3, ref2, atol=tol, rtol=tol), "mismatch (explicit tile)"

    # 4) bf16 inputs (production perf mode); softmax chain stays in f32.
    out_bf = jax.block_until_ready(
        attention_layer(x2, w_t, b, u, compute_dtype=jnp.bfloat16))
    ref_bf = attention_layer_ref(x2.astype(jnp.bfloat16),
                                 w_t.astype(jnp.bfloat16), b, u)
    assert jnp.allclose(out_bf.astype(jnp.float32), ref_bf,
                        atol=2e-2, rtol=2e-2), "mismatch (bf16)"

    print("KERNEL_OK")
</pallas_src>

<mosaic_0001>
module attributes {stable_mosaic.version = 11 : i64} {
  func.func @_attention_kernel(%arg0: i32, %arg1: memref<2x8x32xf32, #tpu.memory_space<vmem>>, %arg2: memref<32x32xf32, #tpu.memory_space<vmem>>, %arg3: memref<1x32xf32, #tpu.memory_space<vmem>>, %arg4: memref<32x1xf32, #tpu.memory_space<vmem>>, %arg5: memref<2x32xf32, #tpu.memory_space<vmem>>) attributes {dimension_semantics = [#tpu.dimension_semantics<parallel>], iteration_bounds = array<i64: 1>, scalar_prefetch = 0 : i64, scratch_operands = 0 : i64, tpu.core_type = #tpu.core_type<tc>, window_params = [{transform_indices = @transform_0, window_bounds = array<i64: 2, 8, 32>}, {pipeline_mode = #tpu.pipeline_mode<synchronous>, transform_indices = @transform_1, window_bounds = array<i64: 32, 32>}, {pipeline_mode = #tpu.pipeline_mode<synchronous>, transform_indices = @transform_2, window_bounds = array<i64: 1, 32>}, {pipeline_mode = #tpu.pipeline_mode<synchronous>, transform_indices = @transform_3, window_bounds = array<i64: 32, 1>}, {transform_indices = @transform_4, window_bounds = array<i64: 2, 32>}]} {
    %c0 = arith.constant 0 : index
    %c0_0 = arith.constant 0 : index
    %c0_1 = arith.constant 0 : index
    %0 = vector.load %arg1[%c0, %c0_0, %c0_1] : memref<2x8x32xf32, #tpu.memory_space<vmem>>, vector<2x8x32xf32>
    %c0_2 = arith.constant 0 : index
    %c0_3 = arith.constant 0 : index
    %1 = vector.load %arg2[%c0_2, %c0_3] : memref<32x32xf32, #tpu.memory_space<vmem>>, vector<32x32xf32>
    %c0_4 = arith.constant 0 : index
    %c0_5 = arith.constant 0 : index
    %2 = vector.load %arg3[%c0_4, %c0_5] : memref<1x32xf32, #tpu.memory_space<vmem>>, vector<1x32xf32>
    %c0_6 = arith.constant 0 : index
    %c0_7 = arith.constant 0 : index
    %3 = vector.load %arg4[%c0_6, %c0_7] : memref<32x1xf32, #tpu.memory_space<vmem>>, vector<32x1xf32>
    %4 = vector.shape_cast %0 : vector<2x8x32xf32> to vector<16x32xf32>
    %cst = arith.constant dense<0.000000e+00> : vector<16x32xf32>
    %5 = tpu.matmul %4, %1, %cst {dimension_numbers = #tpu.dot_dimension_numbers<[1], [0], [0], [1], [0, 0, 1, 1], [], []>, precision = #tpu.contract_precision<fp32>} : vector<16x32xf32>, vector<32x32xf32>, vector<16x32xf32> -> vector<16x32xf32>
    %6 = vector.broadcast %2 : vector<1x32xf32> to vector<16x32xf32>
    %7 = arith.addf %5, %6 : vector<16x32xf32>
    %8 = math.tanh %7 : vector<16x32xf32>
    %cst_8 = arith.constant dense<0.000000e+00> : vector<16x1xf32>
    %9 = tpu.matmul %8, %3, %cst_8 {dimension_numbers = #tpu.dot_dimension_numbers<[1], [0], [0], [1], [0, 0, 1, 1], [], []>, precision = #tpu.contract_precision<fp32>} : vector<16x32xf32>, vector<32x1xf32>, vector<16x1xf32> -> vector<16x1xf32>
    %10 = vector.shape_cast %9 : vector<16x1xf32> to vector<2x8x1xf32>
    %11 = vector.extract_strided_slice %0 {offsets = [0, 0, 0], sizes = [2, 8, 1], strides = [1, 1, 1]} : vector<2x8x32xf32> to vector<2x8x1xf32>
    %cst_9 = arith.constant 0.000000e+00 : f32
    %12 = vector.broadcast %cst_9 : f32 to vector<2x8x1xf32>
    %13 = arith.cmpf one, %11, %12 : vector<2x8x1xf32>
    %cst_10 = arith.constant -1.000000e+32 : f32
    %14 = vector.broadcast %cst_10 : f32 to vector<2x8x1xf32>
    %15 = arith.select %13, %10, %14 : vector<2x8x1xi1>, vector<2x8x1xf32>
    %cst_11 = arith.constant dense<0xFF800000> : vector<2x1xf32>
    %16 = vector.multi_reduction <maximumf>, %15, %cst_11 [1] : vector<2x8x1xf32> to vector<2x1xf32>
    %17 = vector.shape_cast %16 : vector<2x1xf32> to vector<2x1x1xf32>
    %18 = vector.broadcast %17 : vector<2x1x1xf32> to vector<2x8x1xf32>
    %19 = arith.subf %15, %18 : vector<2x8x1xf32>
    %20 = math.exp %19 : vector<2x8x1xf32>
    %cst_12 = arith.constant dense<0.000000e+00> : vector<2x1xf32>
    %21 = vector.multi_reduction <add>, %20, %cst_12 [1] : vector<2x8x1xf32> to vector<2x1xf32>
    %22 = vector.shape_cast %21 : vector<2x1xf32> to vector<2x1x1xf32>
    %23 = vector.broadcast %22 : vector<2x1x1xf32> to vector<2x8x1xf32>
    %24 = arith.divf %20, %23 : vector<2x8x1xf32>
    %25 = vector.broadcast %24 : vector<2x8x1xf32> to vector<2x8x32xf32>
    %26 = arith.mulf %0, %25 : vector<2x8x32xf32>
    %cst_13 = arith.constant dense<0.000000e+00> : vector<2x32xf32>
    %27 = vector.multi_reduction <add>, %26, %cst_13 [1] : vector<2x8x32xf32> to vector<2x32xf32>
    %c0_14 = arith.constant 0 : index
    %c0_15 = arith.constant 0 : index
    %28 = vector.load %arg5[%c0_14, %c0_15] : memref<2x32xf32, #tpu.memory_space<vmem>>, vector<2x32xf32>
    tpu.vector_store %arg5[%c0_14, %c0_15], %27 {strides = array<i32>} : memref<2x32xf32, #tpu.memory_space<vmem>>, vector<2x32xf32>,
    return
  }
  func.func @transform_0(%arg0: i32) -> (i32, i32, i32) {
    %c0_i32 = arith.constant 0 : i32
    %c0_i32_0 = arith.constant 0 : i32
    %c0_i32_1 = arith.constant 0 : i32
    return %arg0, %c0_i32, %c0_i32_0 : i32, i32, i32
  }
  func.func @transform_1(%arg0: i32) -> (i32, i32) {
    %c0_i32 = arith.constant 0 : i32
    %c0_i32_0 = arith.constant 0 : i32
    %c0_i32_1 = arith.constant 0 : i32
    return %c0_i32, %c0_i32_0 : i32, i32
  }
  func.func @transform_2(%arg0: i32) -> (i32, i32) {
    %c0_i32 = arith.constant 0 : i32
    %c0_i32_0 = arith.constant 0 : i32
    %c0_i32_1 = arith.constant 0 : i32
    return %c0_i32, %c0_i32_0 : i32, i32
  }
  func.func @transform_3(%arg0: i32) -> (i32, i32) {
    %c0_i32 = arith.constant 0 : i32
    %c0_i32_0 = arith.constant 0 : i32
    %c0_i32_1 = arith.constant 0 : i32
    return %c0_i32, %c0_i32_0 : i32, i32
  }
  func.func @transform_4(%arg0: i32) -> (i32, i32) {
    %c0_i32 = arith.constant 0 : i32
    %c0_i32_0 = arith.constant 0 : i32
    return %arg0, %c0_i32 : i32, i32
  }
}

</mosaic_0001>

<llo_original>
// kernel: tpu_custom_call.1
$region0: #{tpu_custom_call.1}
  #allocation0 [shape = 'u32[]', space=smem, size = 0x4, offset = 0x4, fixed_abs, tag = 'smem constant byte address 0x4 - core index']
  #allocation1 [shape = 'u32[144,128]{1,0:T(1,128)}', space=vmem, size = 0x12000, scoped, tag = 'internal scratch']
  %s0 = inlined_call_operand.hbm [shape: f32[2,8,32], index: 0, kind: input, shape index: {}]
  %s1 = inlined_call_operand.vmem [shape: f32[32,32], index: 1, kind: input, shape index: {}]
  %s2 = inlined_call_operand.vmem [shape: f32[1,32], index: 2, kind: input, shape index: {}]
  %s3 = inlined_call_operand.vmem [shape: f32[32,1], index: 3, kind: input, shape index: {}]
  %s4 = inlined_call_operand.hbm [shape: f32[2,32], index: 4, kind: output, shape index: {}]
  %s5 = sld [smem:[#allocation0]]
  $region30: #{tpu_custom_call.1} parent=0
    _
  %s7 = ssub.s32 1, %s5
  %s8 = scalar_select 0, %s7, %s5
  $region1: #{tpu_custom_call.1} parent=0
    #allocation2 [shape = 'u8[8192]{0}', space=vmem, size = 0x2000, scoped, tag = 'input window, operand 0, single buffered']
    #allocation3 [shape = 's32[1]{0}', space=sflag, size = 0x4, scoped, tag = 'scoped memory for tpu_custom_call.1']
    #allocation4 [shape = 's32[1]{0}', space=sflag, size = 0x4, scoped, tag = 'scoped memory for tpu_custom_call.1']
    #allocation5 [shape = 'u8[1024]{0}', space=vmem, size = 0x400, scoped, tag = 'output window, operand 0, single buffered']
    %9 = vsyncpa [#allocation3], 0
    %10 = vsyncpa [#allocation4], 0
    // Predicated region
    $region2: #{tpu_custom_call.1} parent=1 // pred_check
      _
    $region3: #{tpu_custom_call.1} parent=1 // pred_check_branch
      %12 = sbr.rel (0) target = $region5
    $region4: #{tpu_custom_call.1} parent=1 // pred_region
      %s14 = ssub.s32 256, 256
      %15 = vsyncadd [#allocation3], %s14
      %s16 = sshll.u32 [#allocation2], 4
      %s17 = int_to_ptr.vmem [resolvable:$true] %s16
      %22 = dma.hbm_to_vmem [thread:$0]  %s0, 256, %s17, [#allocation3], 128, 128, 8
    $region5: #{tpu_custom_call.1} parent=1 // pred_fallthru
      _
    // Predicated region
    $region6: #{tpu_custom_call.1} parent=1 // pred_check
      _
    $region7: #{tpu_custom_call.1} parent=1 // pred_check_branch
      %24 = sbr.rel (0) target = $region9
    $region8: #{tpu_custom_call.1} parent=1 // pred_region
      _
    $region9: #{tpu_custom_call.1} parent=1 // pred_fallthru
      _
    // Predicated region
    $region10: #{tpu_custom_call.1} parent=1 // pred_check
      _
    $region11: #{tpu_custom_call.1} parent=1 // pred_check_branch
      %26 = sbr.rel (0) target = $region13
    $region12: #{tpu_custom_call.1} parent=1 // pred_region
      _
    $region13: #{tpu_custom_call.1} parent=1 // pred_fallthru
      _
    // Predicated region
    $region14: #{tpu_custom_call.1} parent=1 // pred_check
      _
    $region15: #{tpu_custom_call.1} parent=1 // pred_check_branch
      %28 = sbr.rel (0) target = $region17
    $region16: #{tpu_custom_call.1} parent=1 // pred_region
      _
    $region17: #{tpu_custom_call.1} parent=1 // pred_fallthru
      _
    // Predicated region
    $region18: #{tpu_custom_call.1} parent=1 // pred_check
      _
    $region19: #{tpu_custom_call.1} parent=1 // pred_check_branch
      %30 = sbr.rel (0) target = $region21
    $region20: #{tpu_custom_call.1} parent=1 // pred_region
      %31 = dma.done [#allocation3], 256
    $region21: #{tpu_custom_call.1} parent=1 // pred_fallthru
      _
    %v32 = vld [vmem:[#allocation2] sm:$0xff]
    %v33 = vld [vmem:[#allocation2 + $0x8] sm:$0xff]
    %v34 = vld [vmem:[%s1] sm:$0xff]
    %v35 = vld [vmem:[%s1 + $0x8] sm:$0xff]
    %v36 = vld [vmem:[%s1 + $0x10] sm:$0xff]
    %v37 = vld [vmem:[%s1 + $0x18] sm:$0xff]
    %v38 = vld [vmem:[%s2] sm:$0x1]
    %v39 = vld [vmem:[%s3] sm:$0xff]
    %v40 = vld [vmem:[%s3 + $0x8] sm:$0xff]
    %v41 = vld [vmem:[%s3 + $0x10] sm:$0xff]
    %v42 = vld [vmem:[%s3 + $0x18] sm:$0xff]
    %v44 = vlaneseq
    %v45 = vshrl.u32 %v44, 7
    %v46 = vsub.s32 0, %v45
    %v47 = vrot.slane %v38, %v46
    %vm49 = vcmask 261120
    %v51 = vsel %vm49, %v32, 0
    %v54 = vsel %vm49, %v33, 0
    %56 = vmatprep.subr.mxu0 0.0
    %v57 = vand.u32 %v34, 4294901760
    %58 = vmatpush1.msra.mxu0 %v57
    %59 = vmatprep.subr.mxu0 0.0
    %v60 = vand.u32 %v35, 4294901760
    %61 = vmatpush1.msra.mxu0 %v60
    %62 = vmatprep.subr.mxu0 0.0
    %v63 = vand.u32 %v36, 4294901760
    %64 = vmatpush1.msra.mxu0 %v63
    %65 = vmatprep.subr.mxu0 0.0
    %v66 = vand.u32 %v37, 4294901760
    %67 = vmatpush1.msra.mxu0 %v66
    %68 = vmatprep.subr.mxu0 0.0
    %69 = vmatpush1.msra.mxu0 0.0
    %70 = vmatprep.subr.mxu0 0.0
    %71 = vmatpush1.msra.mxu0 0.0
    %72 = vmatprep.subr.mxu0 0.0
    %73 = vmatpush1.msra.mxu0 0.0
    %74 = vmatprep.subr.mxu0 0.0
    %75 = vmatpush1.msra.mxu0 0.0
    %76 = vmatprep.subr.mxu0 0.0
    %77 = vmatpush1.msra.mxu0 0.0
    %78 = vmatprep.subr.mxu0 0.0
    %79 = vmatpush1.msra.mxu0 0.0
    %80 = vmatprep.subr.mxu0 0.0
    %81 = vmatpush1.msra.mxu0 0.0
    %82 = vmatprep.subr.mxu0 0.0
    %83 = vmatpush1.msra.mxu0 0.0
    %84 = vmatprep.subr.mxu0 0.0
    %85 = vmatpush1.msra.mxu0 0.0
    %86 = vmatprep.subr.mxu0 0.0
    %87 = vmatpush1.msra.mxu0 0.0
    %88 = vmatprep.subr.mxu0 0.0
    %89 = vmatpush1.msra.mxu0 0.0
    %90 = vmatprep.subr.mxu0 0.0
    %91 = vmatpush1.msra.mxu0 0.0
    %92 = vmatprep.subr.mxu0 0.0
    %93 = vmatpush1.msra.mxu0 0.0
    %94 = vmatprep.subr.mxu0 0.0
    %95 = vmatpush1.msra.mxu0 0.0
    %96 = vmatprep.subr.mxu0 0.0
    %97 = vmatpush1.msra.mxu0 0.0
    %98 = vmatprep.subr.mxu0 0.0
    %99 = vmatpush1.msra.mxu0 0.0
    %100 = vmatprep.subr.mxu0 0.0
    %101 = vmatpush1.msra.mxu0 0.0
    %102 = vmatprep.subr.mxu0 0.0
    %103 = vmatpush1.msra.mxu0 0.0
    %104 = vmatprep.subr.mxu0 0.0
    %105 = vmatpush1.msra.mxu0 0.0
    %106 = vmatprep.subr.mxu0 0.0
    %107 = vmatpush1.msra.mxu0 0.0
    %108 = vmatprep.subr.mxu0 0.0
    %109 = vmatpush1.msra.mxu0 0.0
    %110 = vmatprep.subr.mxu0 0.0
    %111 = vmatpush1.msra.mxu0 0.0
    %112 = vmatprep.subr.mxu0 0.0
    %113 = vmatpush1.msra.mxu0 0.0
    %114 = vmatprep.subr.mxu0 0.0
    %115 = vmatpush1.msra.mxu0 0.0
    %116 = vmatprep.subr.mxu0 0.0
    %117 = vmatpush1.msra.mxu0 0.0
    %118 = vmatprep.subr.mxu0 0.0
    %119 = vmatpush1.msra.mxu0 0.0
    %120 = vmatprep.subr.mxu0 0.0
    %121 = vmatpush1.msra.mxu0 0.0
    %122 = vmatprep.subr.mxu0 0.0
    %123 = vmatpush1.msra.mxu0 0.0
    %124 = vmatprep.mubr.f32.mxu0 0.0
    %v125 = vand.u32 %v51, 4294901760
    %v126 = vsub.f32 %v51, %v125
    %v127 = vand.u32 %v126, 4294901760
    %v128 = vsub.f32 %v126, %v127
    %v129 = vand.u32 %v128, 4294901760
    %130 = vmatmul.mubr.f32.gmra.mrb[0].mxu0 %v129
    %v131 = vpop.f32.mrb[0].mxu0
    %v132 = vadd.f32 %v47, %v131
    %v133 = vpop.f32.mrb[0].mxu0
    %134 = vmatprep.mubr.f32.mxu0 0.0
    %v135 = vand.u32 %v54, 4294901760
    %v136 = vsub.f32 %v54, %v135
    %v137 = vand.u32 %v136, 4294901760
    %v138 = vsub.f32 %v136, %v137
    %v139 = vand.u32 %v138, 4294901760
    %140 = vmatmul.mubr.f32.gmra.mrb[0].mxu0 %v139
    %v141 = vpop.f32.mrb[0].mxu0
    %v142 = vadd.f32 %v47, %v141
    %v143 = vpop.f32.mrb[0].mxu0
    %144 = vdwg.mxu0
    %145 = vmatprep.subr.mxu0 0.0
    %v146 = vand.u32 %v34, 4294901760
    %v147 = vsub.f32 %v34, %v146
    %v148 = vand.u32 %v147, 4294901760
    %v149 = vsub.f32 %v147, %v148
    %v150 = vand.u32 %v149, 4294901760
    %151 = vmatpush1.msra.mxu0 %v150
    %152 = vmatprep.subr.mxu0 0.0
    %v153 = vand.u32 %v35, 4294901760
    %v154 = vsub.f32 %v35, %v153
    %v155 = vand.u32 %v154, 4294901760
    %v156 = vsub.f32 %v154, %v155
    %v157 = vand.u32 %v156, 4294901760
    %158 = vmatpush1.msra.mxu0 %v157
    %159 = vmatprep.subr.mxu0 0.0
    %v160 = vand.u32 %v36, 4294901760
    %v161 = vsub.f32 %v36, %v160
    %v162 = vand.u32 %v161, 4294901760
    %v163 = vsub.f32 %v161, %v162
    %v164 = vand.u32 %v163, 4294901760
    %165 = vmatpush1.msra.mxu0 %v164
    %166 = vmatprep.subr.mxu0 0.0
    %v167 = vand.u32 %v37, 4294901760
    %v168 = vsub.f32 %v37, %v167
    %v169 = vand.u32 %v168, 4294901760
    %v170 = vsub.f32 %v168, %v169
    %v171 = vand.u32 %v170, 4294901760
    %172 = vmatpush1.msra.mxu0 %v171
    %173 = vmatprep.subr.mxu0 0.0
    %174 = vmatpush1.msra.mxu0 0.0
    %175 = vmatprep.subr.mxu0 0.0
    %176 = vmatpush1.msra.mxu0 0.0
    %177 = vmatprep.subr.mxu0 0.0
    %178 = vmatpush1.msra.mxu0 0.0
    %179 = vmatprep.subr.mxu0 0.0
    %180 = vmatpush1.msra.mxu0 0.0
    %181 = vmatprep.subr.mxu0 0.0
    %182 = vmatpush1.msra.mxu0 0.0
    %183 = vmatprep.subr.mxu0 0.0
    %184 = vmatpush1.msra.mxu0 0.0
    %185 = vmatprep.subr.mxu0 0.0
    %186 = vmatpush1.msra.mxu0 0.0
    %187 = vmatprep.subr.mxu0 0.0
    %188 = vmatpush1.msra.mxu0 0.0
    %189 = vmatprep.subr.mxu0 0.0
    %190 = vmatpush1.msra.mxu0 0.0
    %191 = vmatprep.subr.mxu0 0.0
    %192 = vmatpush1.msra.mxu0 0.0
    %193 = vmatprep.subr.mxu0 0.0
    %194 = vmatpush1.msra.mxu0 0.0
    %195 = vmatprep.subr.mxu0 0.0
    %196 = vmatpush1.msra.mxu0 0.0
    %197 = vmatprep.subr.mxu0 0.0
    %198 = vmatpush1.msra.mxu0 0.0
    %199 = vmatprep.subr.mxu0 0.0
    %200 = vmatpush1.msra.mxu0 0.0
    %201 = vmatprep.subr.mxu0 0.0
    %202 = vmatpush1.msra.mxu0 0.0
    %203 = vmatprep.subr.mxu0 0.0
    %204 = vmatpush1.msra.mxu0 0.0
    %205 = vmatprep.subr.mxu0 0.0
    %206 = vmatpush1.msra.mxu0 0.0
    %207 = vmatprep.subr.mxu0 0.0
    %208 = vmatpush1.msra.mxu0 0.0
    %209 = vmatprep.subr.mxu0 0.0
    %210 = vmatpush1.msra.mxu0 0.0
    %211 = vmatprep.subr.mxu0 0.0
    %212 = vmatpush1.msra.mxu0 0.0
    %213 = vmatprep.subr.mxu0 0.0
    %214 = vmatpush1.msra.mxu0 0.0
    %215 = vmatprep.subr.mxu0 0.0
    %216 = vmatpush1.msra.mxu0 0.0
    %217 = vmatprep.subr.mxu0 0.0
    %218 = vmatpush1.msra.mxu0 0.0
    %219 = vmatprep.subr.mxu0 0.0
    %220 = vmatpush1.msra.mxu0 0.0
    %221 = vmatprep.subr.mxu0 0.0
    %222 = vmatpush1.msra.mxu0 0.0
    %223 = vmatprep.subr.mxu0 0.0
    %224 = vmatpush1.msra.mxu0 0.0
    %225 = vmatprep.subr.mxu0 0.0
    %226 = vmatpush1.msra.mxu0 0.0
    %227 = vmatprep.subr.mxu0 0.0
    %228 = vmatpush1.msra.mxu0 0.0
    %229 = vmatprep.mubr.f32.mxu0 0.0
    %v230 = vand.u32 %v51, 4294901760
    %231 = vmatmul.mubr.f32.gmra.mrb[0].mxu0 %v230
    %v232 = vpop.f32.mrb[0].mxu0
    %v233 = vadd.f32 %v132, %v232
    %v234 = vpop.f32.mrb[0].mxu0
    %235 = vmatprep.mubr.f32.mxu0 0.0
    %v236 = vand.u32 %v54, 4294901760
    %237 = vmatmul.mubr.f32.gmra.mrb[0].mxu0 %v236
    %v238 = vpop.f32.mrb[0].mxu0
    %v239 = vadd.f32 %v142, %v238
    %v240 = vpop.f32.mrb[0].mxu0
    %241 = vdwg.mxu0
    %242 = vmatprep.subr.mxu0 0.0
    %v243 = vand.u32 %v34, 4294901760
    %v244 = vsub.f32 %v34, %v243
    %245 = vmatpush1.msra.mxu0 %v244
    %246 = vmatprep.subr.mxu0 0.0
    %v247 = vand.u32 %v35, 4294901760
    %v248 = vsub.f32 %v35, %v247
    %249 = vmatpush1.msra.mxu0 %v248
    %250 = vmatprep.subr.mxu0 0.0
    %v251 = vand.u32 %v36, 4294901760
    %v252 = vsub.f32 %v36, %v251
    %253 = vmatpush1.msra.mxu0 %v252
    %254 = vmatprep.subr.mxu0 0.0
    %v255 = vand.u32 %v37, 4294901760
    %v256 = vsub.f32 %v37, %v255
    %257 = vmatpush1.msra.mxu0 %v256
    %258 = vmatprep.subr.mxu0 0.0
    %259 = vmatpush1.msra.mxu0 0.0
    %260 = vmatprep.subr.mxu0 0.0
    %261 = vmatpush1.msra.mxu0 0.0
    %262 = vmatprep.subr.mxu0 0.0
    %263 = vmatpush1.msra.mxu0 0.0
    %264 = vmatprep.subr.mxu0 0.0
    %265 = vmatpush1.msra.mxu0 0.0
    %266 = vmatprep.subr.mxu0 0.0
    %267 = vmatpush1.msra.mxu0 0.0
    %268 = vmatprep.subr.mxu0 0.0
    %269 = vmatpush1.msra.mxu0 0.0
    %270 = vmatprep.subr.mxu0 0.0
    %271 = vmatpush1.msra.mxu0 0.0
    %272 = vmatprep.subr.mxu0 0.0
    %273 = vmatpush1.msra.mxu0 0.0
    %274 = vmatprep.subr.mxu0 0.0
    %275 = vmatpush1.msra.mxu0 0.0
    %276 = vmatprep.subr.mxu0 0.0
    %277 = vmatpush1.msra.mxu0 0.0
    %278 = vmatprep.subr.mxu0 0.0
    %279 = vmatpush1.msra.mxu0 0.0
    %280 = vmatprep.subr.mxu0 0.0
    %281 = vmatpush1.msra.mxu0 0.0
    %282 = vmatprep.subr.mxu0 0.0
    %283 = vmatpush1.msra.mxu0 0.0
    %284 = vmatprep.subr.mxu0 0.0
    %285 = vmatpush1.msra.mxu0 0.0
    %286 = vmatprep.subr.mxu0 0.0
    %287 = vmatpush1.msra.mxu0 0.0
    %288 = vmatprep.subr.mxu0 0.0
    %289 = vmatpush1.msra.mxu0 0.0
    %290 = vmatprep.subr.mxu0 0.0
    %291 = vmatpush1.msra.mxu0 0.0
    %292 = vmatprep.subr.mxu0 0.0
    %293 = vmatpush1.msra.mxu0 0.0
    %294 = vmatprep.subr.mxu0 0.0
    %295 = vmatpush1.msra.mxu0 0.0
    %296 = vmatprep.subr.mxu0 0.0
    %297 = vmatpush1.msra.mxu0 0.0
    %298 = vmatprep.subr.mxu0 0.0
    %299 = vmatpush1.msra.mxu0 0.0
    %300 = vmatprep.subr.mxu0 0.0
    %301 = vmatpush1.msra.mxu0 0.0
    %302 = vmatprep.subr.mxu0 0.0
    %303 = vmatpush1.msra.mxu0 0.0
    %304 = vmatprep.subr.mxu0 0.0
    %305 = vmatpush1.msra.mxu0 0.0
    %306 = vmatprep.subr.mxu0 0.0
    %307 = vmatpush1.msra.mxu0 0.0
    %308 = vmatprep.subr.mxu0 0.0
    %309 = vmatpush1.msra.mxu0 0.0
    %310 = vmatprep.subr.mxu0 0.0
    %311 = vmatpush1.msra.mxu0 0.0
    %312 = vmatprep.subr.mxu0 0.0
    %313 = vmatpush1.msra.mxu0 0.0
    %314 = vmatprep.mubr.f32.mxu0 0.0
    %v315 = vand.u32 %v51, 4294901760
    %v316 = vsub.f32 %v51, %v315
    %317 = vmatmul.mubr.f32.gmra.mrb[0].mxu0 %v316
    %v318 = vpop.f32.mrb[0].mxu0
    %v319 = vadd.f32 %v233, %v318
    %v320 = vpop.f32.mrb[0].mxu0
    %321 = vmatprep.mubr.f32.mxu0 0.0
    %v322 = vand.u32 %v54, 4294901760
    %v323 = vsub.f32 %v54, %v322
    %324 = vmatmul.mubr.f32.gmra.mrb[0].mxu0 %v323
    %v325 = vpop.f32.mrb[0].mxu0
    %v326 = vadd.f32 %v239, %v325
    %v327 = vpop.f32.mrb[0].mxu0
    %328 = vdwg.mxu0
    %329 = vmatprep.subr.mxu0 0.0
    %v330 = vand.u32 %v34, 4294901760
    %331 = vmatpush1.msra.mxu0 %v330
    %332 = vmatprep.subr.mxu0 0.0
    %v333 = vand.u32 %v35, 4294901760
    %334 = vmatpush1.msra.mxu0 %v333
    %335 = vmatprep.subr.mxu0 0.0
    %v336 = vand.u32 %v36, 4294901760
    %337 = vmatpush1.msra.mxu0 %v336
    %338 = vmatprep.subr.mxu0 0.0
    %v339 = vand.u32 %v37, 4294901760
    %340 = vmatpush1.msra.mxu0 %v339
    %341 = vmatprep.subr.mxu0 0.0
    %342 = vmatpush1.msra.mxu0 0.0
    %343 = vmatprep.subr.mxu0 0.0
    %344 = vmatpush1.msra.mxu0 0.0
    %345 = vmatprep.subr.mxu0 0.0
    %346 = vmatpush1.msra.mxu0 0.0
    %347 = vmatprep.subr.mxu0 0.0
    %348 = vmatpush1.msra.mxu0 0.0
    %349 = vmatprep.subr.mxu0 0.0
    %350 = vmatpush1.msra.mxu0 0.0
    %351 = vmatprep.subr.mxu0 0.0
    %352 = vmatpush1.msra.mxu0 0.0
    %353 = vmatprep.subr.mxu0 0.0
    %354 = vmatpush1.msra.mxu0 0.0
    %355 = vmatprep.subr.mxu0 0.0
    %356 = vmatpush1.msra.mxu0 0.0
    %357 = vmatprep.subr.mxu0 0.0
    %358 = vmatpush1.msra.mxu0 0.0
    %359 = vmatprep.subr.mxu0 0.0
    %360 = vmatpush1.msra.mxu0 0.0
    %361 = vmatprep.subr.mxu0 0.0
    %362 = vmatpush1.msra.mxu0 0.0
    %363 = vmatprep.subr.mxu0 0.0
    %364 = vmatpush1.msra.mxu0 0.0
    %365 = vmatprep.subr.mxu0 0.0
    %366 = vmatpush1.msra.mxu0 0.0
    %367 = vmatprep.subr.mxu0 0.0
    %368 = vmatpush1.msra.mxu0 0.0
    %369 = vmatprep.subr.mxu0 0.0
    %370 = vmatpush1.msra.mxu0 0.0
    %371 = vmatprep.subr.mxu0 0.0
    %372 = vmatpush1.msra.mxu0 0.0
    %373 = vmatprep.subr.mxu0 0.0
    %374 = vmatpush1.msra.mxu0 0.0
    %375 = vmatprep.subr.mxu0 0.0
    %376 = vmatpush1.msra.mxu0 0.0
    %377 = vmatprep.subr.mxu0 0.0
    %378 = vmatpush1.msra.mxu0 0.0
    %379 = vmatprep.subr.mxu0 0.0
    %380 = vmatpush1.msra.mxu0 0.0
    %381 = vmatprep.subr.mxu0 0.0
    %382 = vmatpush1.msra.mxu0 0.0
    %383 = vmatprep.subr.mxu0 0.0
    %384 = vmatpush1.msra.mxu0 0.0
    %385 = vmatprep.subr.mxu0 0.0
    %386 = vmatpush1.msra.mxu0 0.0
    %387 = vmatprep.subr.mxu0 0.0
    %388 = vmatpush1.msra.mxu0 0.0
    %389 = vmatprep.subr.mxu0 0.0
    %390 = vmatpush1.msra.mxu0 0.0
    %391 = vmatprep.subr.mxu0 0.0
    %392 = vmatpush1.msra.mxu0 0.0
    %393 = vmatprep.subr.mxu0 0.0
    %394 = vmatpush1.msra.mxu0 0.0
    %395 = vmatprep.subr.mxu0 0.0
    %396 = vmatpush1.msra.mxu0 0.0
    %397 = vmatprep.mubr.f32.mxu0 0.0
    %v398 = vand.u32 %v51, 4294901760
    %v399 = vsub.f32 %v51, %v398
    %v400 = vand.u32 %v399, 4294901760
    %401 = vmatmul.mubr.f32.gmra.mrb[0].mxu0 %v400
    %v402 = vpop.f32.mrb[0].mxu0
    %v403 = vadd.f32 %v319, %v402
    %v404 = vpop.f32.mrb[0].mxu0
    %405 = vmatprep.mubr.f32.mxu0 0.0
    %v406 = vand.u32 %v54, 4294901760
    %v407 = vsub.f32 %v54, %v406
    %v408 = vand.u32 %v407, 4294901760
    %409 = vmatmul.mubr.f32.gmra.mrb[0].mxu0 %v408
    %v410 = vpop.f32.mrb[0].mxu0
    %v411 = vadd.f32 %v326, %v410
    %v412 = vpop.f32.mrb[0].mxu0
    %413 = vdwg.mxu0
    %414 = vmatprep.subr.mxu0 0.0
    %v415 = vand.u32 %v34, 4294901760
    %v416 = vsub.f32 %v34, %v415
    %v417 = vand.u32 %v416, 4294901760
    %418 = vmatpush1.msra.mxu0 %v417
    %419 = vmatprep.subr.mxu0 0.0
    %v420 = vand.u32 %v35, 4294901760
    %v421 = vsub.f32 %v35, %v420
    %v422 = vand.u32 %v421, 4294901760
    %423 = vmatpush1.msra.mxu0 %v422
    %424 = vmatprep.subr.mxu0 0.0
    %v425 = vand.u32 %v36, 4294901760
    %v426 = vsub.f32 %v36, %v425
    %v427 = vand.u32 %v426, 4294901760
    %428 = vmatpush1.msra.mxu0 %v427
    %429 = vmatprep.subr.mxu0 0.0
    %v430 = vand.u32 %v37, 4294901760
    %v431 = vsub.f32 %v37, %v430
    %v432 = vand.u32 %v431, 4294901760
    %433 = vmatpush1.msra.mxu0 %v432
    %434 = vmatprep.subr.mxu0 0.0
    %435 = vmatpush1.msra.mxu0 0.0
    %436 = vmatprep.subr.mxu0 0.0
    %437 = vmatpush1.msra.mxu0 0.0
    %438 = vmatprep.subr.mxu0 0.0
    %439 = vmatpush1.msra.mxu0 0.0
    %440 = vmatprep.subr.mxu0 0.0
    %441 = vmatpush1.msra.mxu0 0.0
    %442 = vmatprep.subr.mxu0 0.0
    %443 = vmatpush1.msra.mxu0 0.0
    %444 = vmatprep.subr.mxu0 0.0
    %445 = vmatpush1.msra.mxu0 0.0
    %446 = vmatprep.subr.mxu0 0.0
    %447 = vmatpush1.msra.mxu0 0.0
    %448 = vmatprep.subr.mxu0 0.0
    %449 = vmatpush1.msra.mxu0 0.0
    %450 = vmatprep.subr.mxu0 0.0
    %451 = vmatpush1.msra.mxu0 0.0
    %452 = vmatprep.subr.mxu0 0.0
    %453 = vmatpush1.msra.mxu0 0.0
    %454 = vmatprep.subr.mxu0 0.0
    %455 = vmatpush1.msra.mxu0 0.0
    %456 = vmatprep.subr.mxu0 0.0
    %457 = vmatpush1.msra.mxu0 0.0
    %458 = vmatprep.subr.mxu0 0.0
    %459 = vmatpush1.msra.mxu0 0.0
    %460 = vmatprep.subr.mxu0 0.0
    %461 = vmatpush1.msra.mxu0 0.0
    %462 = vmatprep.subr.mxu0 0.0
    %463 = vmatpush1.msra.mxu0 0.0
    %464 = vmatprep.subr.mxu0 0.0
    %465 = vmatpush1.msra.mxu0 0.0
    %466 = vmatprep.subr.mxu0 0.0
    %467 = vmatpush1.msra.mxu0 0.0
    %468 = vmatprep.subr.mxu0 0.0
    %469 = vmatpush1.msra.mxu0 0.0
    %470 = vmatprep.subr.mxu0 0.0
    %471 = vmatpush1.msra.mxu0 0.0
    %472 = vmatprep.subr.mxu0 0.0
    %473 = vmatpush1.msra.mxu0 0.0
    %474 = vmatprep.subr.mxu0 0.0
    %475 = vmatpush1.msra.mxu0 0.0
    %476 = vmatprep.subr.mxu0 0.0
    %477 = vmatpush1.msra.mxu0 0.0
    %478 = vmatprep.subr.mxu0 0.0
    %479 = vmatpush1.msra.mxu0 0.0
    %480 = vmatprep.subr.mxu0 0.0
    %481 = vmatpush1.msra.mxu0 0.0
    %482 = vmatprep.subr.mxu0 0.0
    %483 = vmatpush1.msra.mxu0 0.0
    %484 = vmatprep.subr.mxu0 0.0
    %485 = vmatpush1.msra.mxu0 0.0
    %486 = vmatprep.subr.mxu0 0.0
    %487 = vmatpush1.msra.mxu0 0.0
    %488 = vmatprep.subr.mxu0 0.0
    %489 = vmatpush1.msra.mxu0 0.0
    %490 = vmatprep.mubr.f32.mxu0 0.0
    %v491 = vand.u32 %v51, 4294901760
    %492 = vmatmul.mubr.f32.gmra.mrb[0].mxu0 %v491
    %v493 = vpop.f32.mrb[0].mxu0
    %v494 = vadd.f32 %v403, %v493
    %v495 = vpop.f32.mrb[0].mxu0
    %496 = vmatprep.mubr.f32.mxu0 0.0
    %v497 = vand.u32 %v54, 4294901760
    %498 = vmatmul.mubr.f32.gmra.mrb[0].mxu0 %v497
    %v499 = vpop.f32.mrb[0].mxu0
    %v500 = vadd.f32 %v411, %v499
    %v501 = vpop.f32.mrb[0].mxu0
    %502 = vdwg.mxu0
    %503 = vmatprep.subr.mxu0 0.0
    %v504 = vand.u32 %v34, 4294901760
    %505 = vmatpush1.msra.mxu0 %v504
    %506 = vmatprep.subr.mxu0 0.0
    %v507 = vand.u32 %v35, 4294901760
    %508 = vmatpush1.msra.mxu0 %v507
    %509 = vmatprep.subr.mxu0 0.0
    %v510 = vand.u32 %v36, 4294901760
    %511 = vmatpush1.msra.mxu0 %v510
    %512 = vmatprep.subr.mxu0 0.0
    %v513 = vand.u32 %v37, 4294901760
    %514 = vmatpush1.msra.mxu0 %v513
    %515 = vmatprep.subr.mxu0 0.0
    %516 = vmatpush1.msra.mxu0 0.0
    %517 = vmatprep.subr.mxu0 0.0
    %518 = vmatpush1.msra.mxu0 0.0
    %519 = vmatprep.subr.mxu0 0.0
    %520 = vmatpush1.msra.mxu0 0.0
    %521 = vmatprep.subr.mxu0 0.0
    %522 = vmatpush1.msra.mxu0 0.0
    %523 = vmatprep.subr.mxu0 0.0
    %524 = vmatpush1.msra.mxu0 0.0
    %525 = vmatprep.subr.mxu0 0.0
    %526 = vmatpush1.msra.mxu0 0.0
    %527 = vmatprep.subr.mxu0 0.0
    %528 = vmatpush1.msra.mxu0 0.0
    %529 = vmatprep.subr.mxu0 0.0
    %530 = vmatpush1.msra.mxu0 0.0
    %531 = vmatprep.subr.mxu0 0.0
    %532 = vmatpush1.msra.mxu0 0.0
    %533 = vmatprep.subr.mxu0 0.0
    %534 = vmatpush1.msra.mxu0 0.0
    %535 = vmatprep.subr.mxu0 0.0
    %536 = vmatpush1.msra.mxu0 0.0
    %537 = vmatprep.subr.mxu0 0.0
    %538 = vmatpush1.msra.mxu0 0.0
    %539 = vmatprep.subr.mxu0 0.0
    %540 = vmatpush1.msra.mxu0 0.0
    %541 = vmatprep.subr.mxu0 0.0
    %542 = vmatpush1.msra.mxu0 0.0
    %543 = vmatprep.subr.mxu0 0.0
    %544 = vmatpush1.msra.mxu0 0.0
    %545 = vmatprep.subr.mxu0 0.0
    %546 = vmatpush1.msra.mxu0 0.0
    %547 = vmatprep.subr.mxu0 0.0
    %548 = vmatpush1.msra.mxu0 0.0
    %549 = vmatprep.subr.mxu0 0.0
    %550 = vmatpush1.msra.mxu0 0.0
    %551 = vmatprep.subr.mxu0 0.0
    %552 = vmatpush1.msra.mxu0 0.0
    %553 = vmatprep.subr.mxu0 0.0
    %554 = vmatpush1.msra.mxu0 0.0
    %555 = vmatprep.subr.mxu0 0.0
    %556 = vmatpush1.msra.mxu0 0.0
    %557 = vmatprep.subr.mxu0 0.0
    %558 = vmatpush1.msra.mxu0 0.0
    %559 = vmatprep.subr.mxu0 0.0
    %560 = vmatpush1.msra.mxu0 0.0
    %561 = vmatprep.subr.mxu0 0.0
    %562 = vmatpush1.msra.mxu0 0.0
    %563 = vmatprep.subr.mxu0 0.0
    %564 = vmatpush1.msra.mxu0 0.0
    %565 = vmatprep.subr.mxu0 0.0
    %566 = vmatpush1.msra.mxu0 0.0
    %567 = vmatprep.subr.mxu0 0.0
    %568 = vmatpush1.msra.mxu0 0.0
    %569 = vmatprep.subr.mxu0 0.0
    %570 = vmatpush1.msra.mxu0 0.0
    %571 = vmatprep.mubr.f32.mxu0 0.0
    %v572 = vand.u32 %v51, 4294901760
    %573 = vmatmul.mubr.f32.gmra.mrb[0].mxu0 %v572
    %v574 = vpop.f32.mrb[0].mxu0
    %v575 = vadd.f32 %v494, %v574
    %v576 = vpop.f32.mrb[0].mxu0
    %577 = vmatprep.mubr.f32.mxu0 0.0
    %v578 = vand.u32 %v54, 4294901760
    %579 = vmatmul.mubr.f32.gmra.mrb[0].mxu0 %v578
    %v580 = vpop.f32.mrb[0].mxu0
    %v581 = vadd.f32 %v500, %v580
    %v582 = vpop.f32.mrb[0].mxu0
    %583 = vdwg.mxu0
    %v584 = vtanh.pop %v575
    %v585 = vtanh.pop %v581
    %v587 = vsel %vm49, %v584, 0
    %v590 = vsel %vm49, %v585, 0
    %592 = vmatprep.subr.mxu0 0.0
    %v593 = vand.u32 %v39, 4294901760
    %594 = vmatpush1.msra.mxu0 %v593
    %595 = vmatprep.subr.mxu0 0.0
    %v596 = vand.u32 %v40, 4294901760
    %597 = vmatpush1.msra.mxu0 %v596
    %598 = vmatprep.subr.mxu0 0.0
    %v599 = vand.u32 %v41, 4294901760
    %600 = vmatpush1.msra.mxu0 %v599
    %601 = vmatprep.subr.mxu0 0.0
    %v602 = vand.u32 %v42, 4294901760
    %603 = vmatpush1.msra.mxu0 %v602
    %604 = vmatprep.subr.mxu0 0.0
    %605 = vmatpush1.msra.mxu0 0.0
    %606 = vmatprep.subr.mxu0 0.0
    %607 = vmatpush1.msra.mxu0 0.0
    %608 = vmatprep.subr.mxu0 0.0
    %609 = vmatpush1.msra.mxu0 0.0
    %610 = vmatprep.subr.mxu0 0.0
    %611 = vmatpush1.msra.mxu0 0.0
    %612 = vmatprep.subr.mxu0 0.0
    %613 = vmatpush1.msra.mxu0 0.0
    %614 = vmatprep.subr.mxu0 0.0
    %615 = vmatpush1.msra.mxu0 0.0
    %616 = vmatprep.subr.mxu0 0.0
    %617 = vmatpush1.msra.mxu0 0.0
    %618 = vmatprep.subr.mxu0 0.0
    %619 = vmatpush1.msra.mxu0 0.0
    %620 = vmatprep.subr.mxu0 0.0
    %621 = vmatpush1.msra.mxu0 0.0
    %622 = vmatprep.subr.mxu0 0.0
    %623 = vmatpush1.msra.mxu0 0.0
    %624 = vmatprep.subr.mxu0 0.0
    %625 = vmatpush1.msra.mxu0 0.0
    %626 = vmatprep.subr.mxu0 0.0
    %627 = vmatpush1.msra.mxu0 0.0
    %628 = vmatprep.subr.mxu0 0.0
    %629 = vmatpush1.msra.mxu0 0.0
    %630 = vmatprep.subr.mxu0 0.0
    %631 = vmatpush1.msra.mxu0 0.0
    %632 = vmatprep.subr.mxu0 0.0
    %633 = vmatpush1.msra.mxu0 0.0
    %634 = vmatprep.subr.mxu0 0.0
    %635 = vmatpush1.msra.mxu0 0.0
    %636 = vmatprep.subr.mxu0 0.0
    %637 = vmatpush1.msra.mxu0 0.0
    %638 = vmatprep.subr.mxu0 0.0
    %639 = vmatpush1.msra.mxu0 0.0
    %640 = vmatprep.subr.mxu0 0.0
    %641 = vmatpush1.msra.mxu0 0.0
    %642 = vmatprep.subr.mxu0 0.0
    %643 = vmatpush1.msra.mxu0 0.0
    %644 = vmatprep.subr.mxu0 0.0
    %645 = vmatpush1.msra.mxu0 0.0
    %646 = vmatprep.subr.mxu0 0.0
    %647 = vmatpush1.msra.mxu0 0.0
    %648 = vmatprep.subr.mxu0 0.0
    %649 = vmatpush1.msra.mxu0 0.0
    %650 = vmatprep.subr.mxu0 0.0
    %651 = vmatpush1.msra.mxu0 0.0
    %652 = vmatprep.subr.mxu0 0.0
    %653 = vmatpush1.msra.mxu0 0.0
    %654 = vmatprep.subr.mxu0 0.0
    %655 = vmatpush1.msra.mxu0 0.0
    %656 = vmatprep.subr.mxu0 0.0
    %657 = vmatpush1.msra.mxu0 0.0
    %658 = vmatprep.subr.mxu0 0.0
    %659 = vmatpush1.msra.mxu0 0.0
    %660 = vmatprep.mubr.f32.mxu0 0.0
    %v661 = vand.u32 %v587, 4294901760
    %v662 = vsub.f32 %v587, %v661
    %v663 = vand.u32 %v662, 4294901760
    %v664 = vsub.f32 %v662, %v663
    %v665 = vand.u32 %v664, 4294901760
    %666 = vmatmul.mubr.f32.gmra.mrb[0].mxu0 %v665
    %v667 = vpop.f32.mrb[0].mxu0
    %v668 = vadd.f32 0.0, %v667
    %v669 = vpop.f32.mrb[0].mxu0
    %670 = vmatprep.mubr.f32.mxu0 0.0
    %v671 = vand.u32 %v590, 4294901760
    %v672 = vsub.f32 %v590, %v671
    %v673 = vand.u32 %v672, 4294901760
    %v674 = vsub.f32 %v672, %v673
    %v675 = vand.u32 %v674, 4294901760
    %676 = vmatmul.mubr.f32.gmra.mrb[0].mxu0 %v675
    %v677 = vpop.f32.mrb[0].mxu0
    %v678 = vadd.f32 0.0, %v677
    %v679 = vpop.f32.mrb[0].mxu0
    %680 = vdwg.mxu0
    %681 = vmatprep.subr.mxu0 0.0
    %v682 = vand.u32 %v39, 4294901760
    %v683 = vsub.f32 %v39, %v682
    %v684 = vand.u32 %v683, 4294901760
    %v685 = vsub.f32 %v683, %v684
    %v686 = vand.u32 %v685, 4294901760
    %687 = vmatpush1.msra.mxu0 %v686
    %688 = vmatprep.subr.mxu0 0.0
    %v689 = vand.u32 %v40, 4294901760
    %v690 = vsub.f32 %v40, %v689
    %v691 = vand.u32 %v690, 4294901760
    %v692 = vsub.f32 %v690, %v691
    %v693 = vand.u32 %v692, 4294901760
    %694 = vmatpush1.msra.mxu0 %v693
    %695 = vmatprep.subr.mxu0 0.0
    %v696 = vand.u32 %v41, 4294901760
    %v697 = vsub.f32 %v41, %v696
    %v698 = vand.u32 %v697, 4294901760
    %v699 = vsub.f32 %v697, %v698
    %v700 = vand.u32 %v699, 4294901760
    %701 = vmatpush1.msra.mxu0 %v700
    %702 = vmatprep.subr.mxu0 0.0
    %v703 = vand.u32 %v42, 4294901760
    %v704 = vsub.f32 %v42, %v703
    %v705 = vand.u32 %v704, 4294901760
    %v706 = vsub.f32 %v704, %v705
    %v707 = vand.u32 %v706, 4294901760
    %708 = vmatpush1.msra.mxu0 %v707
    %709 = vmatprep.subr.mxu0 0.0
    %710 = vmatpush1.msra.mxu0 0.0
    %711 = vmatprep.subr.mxu0 0.0
    %712 = vmatpush1.msra.mxu0 0.0
    %713 = vmatprep.subr.mxu0 0.0
    %714 = vmatpush1.msra.mxu0 0.0
    %715 = vmatprep.subr.mxu0 0.0
    %716 = vmatpush1.msra.mxu0 0.0
    %717 = vmatprep.subr.mxu0 0.0
    %718 = vmatpush1.msra.mxu0 0.0
    %719 = vmatprep.subr.mxu0 0.0
    %720 = vmatpush1.msra.mxu0 0.0
    %721 = vmatprep.subr.mxu0 0.0
    %722 = vmatpush1.msra.mxu0 0.0
    %723 = vmatprep.subr.mxu0 0.0
    %724 = vmatpush1.msra.mxu0 0.0
    %725 = vmatprep.subr.mxu0 0.0
    %726 = vmatpush1.msra.mxu0 0.0
    %727 = vmatprep.subr.mxu0 0.0
    %728 = vmatpush1.msra.mxu0 0.0
    %729 = vmatprep.subr.mxu0 0.0
    %730 = vmatpush1.msra.mxu0 0.0
    %731 = vmatprep.subr.mxu0 0.0
    %732 = vmatpush1.msra.mxu0 0.0
    %733 = vmatprep.subr.mxu0 0.0
    %734 = vmatpush1.msra.mxu0 0.0
    %735 = vmatprep.subr.mxu0 0.0
    %736 = vmatpush1.msra.mxu0 0.0
    %737 = vmatprep.subr.mxu0 0.0
    %738 = vmatpush1.msra.mxu0 0.0
    %739 = vmatprep.subr.mxu0 0.0
    %740 = vmatpush1.msra.mxu0 0.0
    %741 = vmatprep.subr.mxu0 0.0
    %742 = vmatpush1.msra.mxu0 0.0
    %743 = vmatprep.subr.mxu0 0.0
    %744 = vmatpush1.msra.mxu0 0.0
    %745 = vmatprep.subr.mxu0 0.0
    %746 = vmatpush1.msra.mxu0 0.0
    %747 = vmatprep.subr.mxu0 0.0
    %748 = vmatpush1.msra.mxu0 0.0
    %749 = vmatprep.subr.mxu0 0.0
    %750 = vmatpush1.msra.mxu0 0.0
    %751 = vmatprep.subr.mxu0 0.0
    %752 = vmatpush1.msra.mxu0 0.0
    %753 = vmatprep.subr.mxu0 0.0
    %754 = vmatpush1.msra.mxu0 0.0
    %755 = vmatprep.subr.mxu0 0.0
    %756 = vmatpush1.msra.mxu0 0.0
    %757 = vmatprep.subr.mxu0 0.0
    %758 = vmatpush1.msra.mxu0 0.0
    %759 = vmatprep.subr.mxu0 0.0
    %760 = vmatpush1.msra.mxu0 0.0
    %761 = vmatprep.subr.mxu0 0.0
    %762 = vmatpush1.msra.mxu0 0.0
    %763 = vmatprep.subr.mxu0 0.0
    %764 = vmatpush1.msra.mxu0 0.0
    %765 = vmatprep.mubr.f32.mxu0 0.0
    %v766 = vand.u32 %v587, 4294901760
    %767 = vmatmul.mubr.f32.gmra.mrb[0].mxu0 %v766
    %v768 = vpop.f32.mrb[0].mxu0
    %v769 = vadd.f32 %v668, %v768
    %v770 = vpop.f32.mrb[0].mxu0
    %771 = vmatprep.mubr.f32.mxu0 0.0
    %v772 = vand.u32 %v590, 4294901760
    %773 = vmatmul.mubr.f32.gmra.mrb[0].mxu0 %v772
    %v774 = vpop.f32.mrb[0].mxu0
    %v775 = vadd.f32 %v678, %v774
    %v776 = vpop.f32.mrb[0].mxu0
    %777 = vdwg.mxu0
    %778 = vmatprep.subr.mxu0 0.0
    %v779 = vand.u32 %v39, 4294901760
    %v780 = vsub.f32 %v39, %v779
    %781 = vmatpush1.msra.mxu0 %v780
    %782 = vmatprep.subr.mxu0 0.0
    %v783 = vand.u32 %v40, 4294901760
    %v784 = vsub.f32 %v40, %v783
    %785 = vmatpush1.msra.mxu0 %v784
    %786 = vmatprep.subr.mxu0 0.0
    %v787 = vand.u32 %v41, 4294901760
    %v788 = vsub.f32 %v41, %v787
    %789 = vmatpush1.msra.mxu0 %v788
    %790 = vmatprep.subr.mxu0 0.0
    %v791 = vand.u32 %v42, 4294901760
    %v792 = vsub.f32 %v42, %v791
    %793 = vmatpush1.msra.mxu0 %v792
    %794 = vmatprep.subr.mxu0 0.0
    %795 = vmatpush1.msra.mxu0 0.0
    %796 = vmatprep.subr.mxu0 0.0
    %797 = vmatpush1.msra.mxu0 0.0
    %798 = vmatprep.subr.mxu0 0.0
    %799 = vmatpush1.msra.mxu0 0.0
    %800 = vmatprep.subr.mxu0 0.0
    %801 = vmatpush1.msra.mxu0 0.0
    %802 = vmatprep.subr.mxu0 0.0
    %803 = vmatpush1.msra.mxu0 0.0
    %804 = vmatprep.subr.mxu0 0.0
    %805 = vmatpush1.msra.mxu0 0.0
    %806 = vmatprep.subr.mxu0 0.0
    %807 = vmatpush1.msra.mxu0 0.0
    %808 = vmatprep.subr.mxu0 0.0
    %809 = vmatpush1.msra.mxu0 0.0
    %810 = vmatprep.subr.mxu0 0.0
    %811 = vmatpush1.msra.mxu0 0.0
    %812 = vmatprep.subr.mxu0 0.0
    %813 = vmatpush1.msra.mxu0 0.0
    %814 = vmatprep.subr.mxu0 0.0
    %815 = vmatpush1.msra.mxu0 0.0
    %816 = vmatprep.subr.mxu0 0.0
    %817 = vmatpush1.msra.mxu0 0.0
    %818 = vmatprep.subr.mxu0 0.0
    %819 = vmatpush1.msra.mxu0 0.0
    %820 = vmatprep.subr.mxu0 0.0
    %821 = vmatpush1.msra.mxu0 0.0
    %822 = vmatprep.subr.mxu0 0.0
    %823 = vmatpush1.msra.mxu0 0.0
    %824 = vmatprep.subr.mxu0 0.0
    %825 = vmatpush1.msra.mxu0 0.0
    %826 = vmatprep.subr.mxu0 0.0
    %827 = vmatpush1.msra.mxu0 0.0
    %828 = vmatprep.subr.mxu0 0.0
    %829 = vmatpush1.msra.mxu0 0.0
    %830 = vmatprep.subr.mxu0 0.0
    %831 = vmatpush1.msra.mxu0 0.0
    %832 = vmatprep.subr.mxu0 0.0
    %833 = vmatpush1.msra.mxu0 0.0
    %834 = vmatprep.subr.mxu0 0.0
    %835 = vmatpush1.msra.mxu0 0.0
    %836 = vmatprep.subr.mxu0 0.0
    %837 = vmatpush1.msra.mxu0 0.0
    %838 = vmatprep.subr.mxu0 0.0
    %839 = vmatpush1.msra.mxu0 0.0
    %840 = vmatprep.subr.mxu0 0.0
    %841 = vmatpush1.msra.mxu0 0.0
    %842 = vmatprep.subr.mxu0 0.0
    %843 = vmatpush1.msra.mxu0 0.0
    %844 = vmatprep.subr.mxu0 0.0
    %845 = vmatpush1.msra.mxu0 0.0
    %846 = vmatprep.subr.mxu0 0.0
    %847 = vmatpush1.msra.mxu0 0.0
    %848 = vmatprep.subr.mxu0 0.0
    %849 = vmatpush1.msra.mxu0 0.0
    %850 = vmatprep.mubr.f32.mxu0 0.0
    %v851 = vand.u32 %v587, 4294901760
    %v852 = vsub.f32 %v587, %v851
    %853 = vmatmul.mubr.f32.gmra.mrb[0].mxu0 %v852
    %v854 = vpop.f32.mrb[0].mxu0
    %v855 = vadd.f32 %v769, %v854
    %v856 = vpop.f32.mrb[0].mxu0
    %857 = vmatprep.mubr.f32.mxu0 0.0
    %v858 = vand.u32 %v590, 4294901760
    %v859 = vsub.f32 %v590, %v858
    %860 = vmatmul.mubr.f32.gmra.mrb[0].mxu0 %v859
    %v861 = vpop.f32.mrb[0].mxu0
    %v862 = vadd.f32 %v775, %v861
    %v863 = vpop.f32.mrb[0].mxu0
    %864 = vdwg.mxu0
    %865 = vmatprep.subr.mxu0 0.0
    %v866 = vand.u32 %v39, 4294901760
    %867 = vmatpush1.msra.mxu0 %v866
    %868 = vmatprep.subr.mxu0 0.0
    %v869 = vand.u32 %v40, 4294901760
    %870 = vmatpush1.msra.mxu0 %v869
    %871 = vmatprep.subr.mxu0 0.0
    %v872 = vand.u32 %v41, 4294901760
    %873 = vmatpush1.msra.mxu0 %v872
    %874 = vmatprep.subr.mxu0 0.0
    %v875 = vand.u32 %v42, 4294901760
    %876 = vmatpush1.msra.mxu0 %v875
    %877 = vmatprep.subr.mxu0 0.0
    %878 = vmatpush1.msra.mxu0 0.0
    %879 = vmatprep.subr.mxu0 0.0
    %880 = vmatpush1.msra.mxu0 0.0
    %881 = vmatprep.subr.mxu0 0.0
    %882 = vmatpush1.msra.mxu0 0.0
    %883 = vmatprep.subr.mxu0 0.0
    %884 = vmatpush1.msra.mxu0 0.0
    %885 = vmatprep.subr.mxu0 0.0
    %886 = vmatpush1.msra.mxu0 0.0
    %887 = vmatprep.subr.mxu0 0.0
    %888 = vmatpush1.msra.mxu0 0.0
    %889 = vmatprep.subr.mxu0 0.0
    %890 = vmatpush1.msra.mxu0 0.0
    %891 = vmatprep.subr.mxu0 0.0
    %892 = vmatpush1.msra.mxu0 0.0
    %893 = vmatprep.subr.mxu0 0.0
    %894 = vmatpush1.msra.mxu0 0.0
    %895 = vmatprep.subr.mxu0 0.0
    %896 = vmatpush1.msra.mxu0 0.0
    %897 = vmatprep.subr.mxu0 0.0
    %898 = vmatpush1.msra.mxu0 0.0
    %899 = vmatprep.subr.mxu0 0.0
    %900 = vmatpush1.msra.mxu0 0.0
    %901 = vmatprep.subr.mxu0 0.0
    %902 = vmatpush1.msra.mxu0 0.0
    %903 = vmatprep.subr.mxu0 0.0
    %904 = vmatpush1.msra.mxu0 0.0
    %905 = vmatprep.subr.mxu0 0.0
    %906 = vmatpush1.msra.mxu0 0.0
    %907 = vmatprep.subr.mxu0 0.0
    %908 = vmatpush1.msra.mxu0 0.0
    %909 = vmatprep.subr.mxu0 0.0
    %910 = vmatpush1.msra.mxu0 0.0
    %911 = vmatprep.subr.mxu0 0.0
    %912 = vmatpush1.msra.mxu0 0.0
    %913 = vmatprep.subr.mxu0 0.0
    %914 = vmatpush1.msra.mxu0 0.0
    %915 = vmatprep.subr.mxu0 0.0
    %916 = vmatpush1.msra.mxu0 0.0
    %917 = vmatprep.subr.mxu0 0.0
    %918 = vmatpush1.msra.mxu0 0.0
    %919 = vmatprep.subr.mxu0 0.0
    %920 = vmatpush1.msra.mxu0 0.0
    %921 = vmatprep.subr.mxu0 0.0
    %922 = vmatpush1.msra.mxu0 0.0
    %923 = vmatprep.subr.mxu0 0.0
    %924 = vmatpush1.msra.mxu0 0.0
    %925 = vmatprep.subr.mxu0 0.0
    %926 = vmatpush1.msra.mxu0 0.0
    %927 = vmatprep.subr.mxu0 0.0
    %928 = vmatpush1.msra.mxu0 0.0
    %929 = vmatprep.subr.mxu0 0.0
    %930 = vmatpush1.msra.mxu0 0.0
    %931 = vmatprep.subr.mxu0 0.0
    %932 = vmatpush1.msra.mxu0 0.0
    %933 = vmatprep.mubr.f32.mxu0 0.0
    %v934 = vand.u32 %v587, 4294901760
    %v935 = vsub.f32 %v587, %v934
    %v936 = vand.u32 %v935, 4294901760
    %937 = vmatmul.mubr.f32.gmra.mrb[0].mxu0 %v936
    %v938 = vpop.f32.mrb[0].mxu0
    %v939 = vadd.f32 %v855, %v938
    %v940 = vpop.f32.mrb[0].mxu0
    %941 = vmatprep.mubr.f32.mxu0 0.0
    %v942 = vand.u32 %v590, 4294901760
    %v943 = vsub.f32 %v590, %v942
    %v944 = vand.u32 %v943, 4294901760
    %945 = vmatmul.mubr.f32.gmra.mrb[0].mxu0 %v944
    %v946 = vpop.f32.mrb[0].mxu0
    %v947 = vadd.f32 %v862, %v946
    %v948 = vpop.f32.mrb[0].mxu0
    %949 = vdwg.mxu0
    %950 = vmatprep.subr.mxu0 0.0
    %v951 = vand.u32 %v39, 4294901760
    %v952 = vsub.f32 %v39, %v951
    %v953 = vand.u32 %v952, 4294901760
    %954 = vmatpush1.msra.mxu0 %v953
    %955 = vmatprep.subr.mxu0 0.0
    %v956 = vand.u32 %v40, 4294901760
    %v957 = vsub.f32 %v40, %v956
    %v958 = vand.u32 %v957, 4294901760
    %959 = vmatpush1.msra.mxu0 %v958
    %960 = vmatprep.subr.mxu0 0.0
    %v961 = vand.u32 %v41, 4294901760
    %v962 = vsub.f32 %v41, %v961
    %v963 = vand.u32 %v962, 4294901760
    %964 = vmatpush1.msra.mxu0 %v963
    %965 = vmatprep.subr.mxu0 0.0
    %v966 = vand.u32 %v42, 4294901760
    %v967 = vsub.f32 %v42, %v966
    %v968 = vand.u32 %v967, 4294901760
    %969 = vmatpush1.msra.mxu0 %v968
    %970 = vmatprep.subr.mxu0 0.0
    %971 = vmatpush1.msra.mxu0 0.0
    %972 = vmatprep.subr.mxu0 0.0
    %973 = vmatpush1.msra.mxu0 0.0
    %974 = vmatprep.subr.mxu0 0.0
    %975 = vmatpush1.msra.mxu0 0.0
    %976 = vmatprep.subr.mxu0 0.0
    %977 = vmatpush1.msra.mxu0 0.0
    %978 = vmatprep.subr.mxu0 0.0
    %979 = vmatpush1.msra.mxu0 0.0
    %980 = vmatprep.subr.mxu0 0.0
    %981 = vmatpush1.msra.mxu0 0.0
    %982 = vmatprep.subr.mxu0 0.0
    %983 = vmatpush1.msra.mxu0 0.0
    %984 = vmatprep.subr.mxu0 0.0
    %985 = vmatpush1.msra.mxu0 0.0
    %986 = vmatprep.subr.mxu0 0.0
    %987 = vmatpush1.msra.mxu0 0.0
    %988 = vmatprep.subr.mxu0 0.0
    %989 = vmatpush1.msra.mxu0 0.0
    %990 = vmatprep.subr.mxu0 0.0
    %991 = vmatpush1.msra.mxu0 0.0
    %992 = vmatprep.subr.mxu0 0.0
    %993 = vmatpush1.msra.mxu0 0.0
    %994 = vmatprep.subr.mxu0 0.0
    %995 = vmatpush1.msra.mxu0 0.0
    %996 = vmatprep.subr.mxu0 0.0
    %997 = vmatpush1.msra.mxu0 0.0
    %998 = vmatprep.subr.mxu0 0.0
    %999 = vmatpush1.msra.mxu0 0.0
    %1000 = vmatprep.subr.mxu0 0.0
    %1001 = vmatpush1.msra.mxu0 0.0
    %1002 = vmatprep.subr.mxu0 0.0
    %1003 = vmatpush1.msra.mxu0 0.0
    %1004 = vmatprep.subr.mxu0 0.0
    %1005 = vmatpush1.msra.mxu0 0.0
    %1006 = vmatprep.subr.mxu0 0.0
    %1007 = vmatpush1.msra.mxu0 0.0
    %1008 = vmatprep.subr.mxu0 0.0
    %1009 = vmatpush1.msra.mxu0 0.0
    %1010 = vmatprep.subr.mxu0 0.0
    %1011 = vmatpush1.msra.mxu0 0.0
    %1012 = vmatprep.subr.mxu0 0.0
    %1013 = vmatpush1.msra.mxu0 0.0
    %1014 = vmatprep.subr.mxu0 0.0
    %1015 = vmatpush1.msra.mxu0 0.0
    %1016 = vmatprep.subr.mxu0 0.0
    %1017 = vmatpush1.msra.mxu0 0.0
    %1018 = vmatprep.subr.mxu0 0.0
    %1019 = vmatpush1.msra.mxu0 0.0
    %1020 = vmatprep.subr.mxu0 0.0
    %1021 = vmatpush1.msra.mxu0 0.0
    %1022 = vmatprep.subr.mxu0 0.0
    %1023 = vmatpush1.msra.mxu0 0.0
    %1024 = vmatprep.subr.mxu0 0.0
    %1025 = vmatpush1.msra.mxu0 0.0
    %1026 = vmatprep.mubr.f32.mxu0 0.0
    %v1027 = vand.u32 %v587, 4294901760
    %1028 = vmatmul.mubr.f32.gmra.mrb[0].mxu0 %v1027
    %v1029 = vpop.f32.mrb[0].mxu0
    %v1030 = vadd.f32 %v939, %v1029
    %v1031 = vpop.f32.mrb[0].mxu0
    %1032 = vmatprep.mubr.f32.mxu0 0.0
    %v1033 = vand.u32 %v590, 4294901760
    %1034 = vmatmul.mubr.f32.gmra.mrb[0].mxu0 %v1033
    %v1035 = vpop.f32.mrb[0].mxu0
    %v1036 = vadd.f32 %v947, %v1035
    %v1037 = vpop.f32.mrb[0].mxu0
    %1038 = vdwg.mxu0
    %1039 = vmatprep.subr.mxu0 0.0
    %v1040 = vand.u32 %v39, 4294901760
    %1041 = vmatpush1.msra.mxu0 %v1040
    %1042 = vmatprep.subr.mxu0 0.0
    %v1043 = vand.u32 %v40, 4294901760
    %1044 = vmatpush1.msra.mxu0 %v1043
    %1045 = vmatprep.subr.mxu0 0.0
    %v1046 = vand.u32 %v41, 4294901760
    %1047 = vmatpush1.msra.mxu0 %v1046
    %1048 = vmatprep.subr.mxu0 0.0
    %v1049 = vand.u32 %v42, 4294901760
    %1050 = vmatpush1.msra.mxu0 %v1049
    %1051 = vmatprep.subr.mxu0 0.0
    %1052 = vmatpush1.msra.mxu0 0.0
    %1053 = vmatprep.subr.mxu0 0.0
    %1054 = vmatpush1.msra.mxu0 0.0
    %1055 = vmatprep.subr.mxu0 0.0
    %1056 = vmatpush1.msra.mxu0 0.0
    %1057 = vmatprep.subr.mxu0 0.0
    %1058 = vmatpush1.msra.mxu0 0.0
    %1059 = vmatprep.subr.mxu0 0.0
    %1060 = vmatpush1.msra.mxu0 0.0
    %1061 = vmatprep.subr.mxu0 0.0
    %1062 = vmatpush1.msra.mxu0 0.0
    %1063 = vmatprep.subr.mxu0 0.0
    %1064 = vmatpush1.msra.mxu0 0.0
    %1065 = vmatprep.subr.mxu0 0.0
    %1066 = vmatpush1.msra.mxu0 0.0
    %1067 = vmatprep.subr.mxu0 0.0
    %1068 = vmatpush1.msra.mxu0 0.0
    %1069 = vmatprep.subr.mxu0 0.0
    %1070 = vmatpush1.msra.mxu0 0.0
    %1071 = vmatprep.subr.mxu0 0.0
    %1072 = vmatpush1.msra.mxu0 0.0
    %1073 = vmatprep.subr.mxu0 0.0
    %1074 = vmatpush1.msra.mxu0 0.0
    %1075 = vmatprep.subr.mxu0 0.0
    %1076 = vmatpush1.msra.mxu0 0.0
    %1077 = vmatprep.subr.mxu0 0.0
    %1078 = vmatpush1.msra.mxu0 0.0
    %1079 = vmatprep.subr.mxu0 0.0
    %1080 = vmatpush1.msra.mxu0 0.0
    %1081 = vmatprep.subr.mxu0 0.0
    %1082 = vmatpush1.msra.mxu0 0.0
    %1083 = vmatprep.subr.mxu0 0.0
    %1084 = vmatpush1.msra.mxu0 0.0
    %1085 = vmatprep.subr.mxu0 0.0
    %1086 = vmatpush1.msra.mxu0 0.0
    %1087 = vmatprep.subr.mxu0 0.0
    %1088 = vmatpush1.msra.mxu0 0.0
    %1089 = vmatprep.subr.mxu0 0.0
    %1090 = vmatpush1.msra.mxu0 0.0
    %1091 = vmatprep.subr.mxu0 0.0
    %1092 = vmatpush1.msra.mxu0 0.0
    %1093 = vmatprep.subr.mxu0 0.0
    %1094 = vmatpush1.msra.mxu0 0.0
    %1095 = vmatprep.subr.mxu0 0.0
    %1096 = vmatpush1.msra.mxu0 0.0
    %1097 = vmatprep.subr.mxu0 0.0
    %1098 = vmatpush1.msra.mxu0 0.0
    %1099 = vmatprep.subr.mxu0 0.0
    %1100 = vmatpush1.msra.mxu0 0.0
    %1101 = vmatprep.subr.mxu0 0.0
    %1102 = vmatpush1.msra.mxu0 0.0
    %1103 = vmatprep.subr.mxu0 0.0
    %1104 = vmatpush1.msra.mxu0 0.0
    %1105 = vmatprep.subr.mxu0 0.0
    %1106 = vmatpush1.msra.mxu0 0.0
    %1107 = vmatprep.mubr.f32.mxu0 0.0
    %v1108 = vand.u32 %v587, 4294901760
    %1109 = vmatmul.mubr.f32.gmra.mrb[0].mxu0 %v1108
    %v1110 = vpop.f32.mrb[0].mxu0
    %v1111 = vadd.f32 %v1030, %v1110
    %v1112 = vpop.f32.mrb[0].mxu0
    %1113 = vmatprep.mubr.f32.mxu0 0.0
    %v1114 = vand.u32 %v590, 4294901760
    %1115 = vmatmul.mubr.f32.gmra.mrb[0].mxu0 %v1114
    %v1116 = vpop.f32.mrb[0].mxu0
    %v1117 = vadd.f32 %v1036, %v1116
    %v1118 = vpop.f32.mrb[0].mxu0
    %1119 = vdwg.mxu0
    %vm1120 = vcmp.ne.f32.partialorder %v32, 0.0
    %vm1121 = vcmp.ne.f32.partialorder %v33, 0.0
    %v1122 = vsel %vm1120, %v1111, -1e+32
    %v1123 = vsel %vm1121, %v1117, -1e+32
    %vm1124 = vcmask 7168
    %v1125 = vsel %vm1124, %v1122, -inf
    %v1126 = vrot.slane %v1125, 4
    %v1127 = vmax.f32 %v1125, %v1126
    %v1128 = vrot.slane %v1127, 2
    %v1129 = vmax.f32 %v1127, %v1128
    %v1130 = vrot.slane %v1129, 1
    %v1131 = vmax.f32 %v1129, %v1130
    %v1132 = vsel %vm1124, %v1123, -inf
    %v1133 = vrot.slane %v1132, 4
    %v1134 = vmax.f32 %v1132, %v1133
    %v1135 = vrot.slane %v1134, 2
    %v1136 = vmax.f32 %v1134, %v1135
    %v1137 = vrot.slane %v1136, 1
    %v1138 = vmax.f32 %v1136, %v1137
    %v1139 = vsub.f32 %v1122, %v1131
    %v1140 = vsub.f32 %v1123, %v1138
    %v1141 = vmul.f32 %v1139, 1.442695
    %v1142 = vpow.pop %v1141
    %v1143 = vmul.f32 %v1140, 1.442695
    %v1144 = vpow.pop %v1143
    %v1145 = vsel %vm1124, %v1142, 0.0
    %v1146 = vrot.slane %v1145, 4
    %v1147 = vadd.f32 %v1145, %v1146
    %v1148 = vrot.slane %v1147, 2
    %v1149 = vadd.f32 %v1147, %v1148
    %v1150 = vrot.slane %v1149, 1
    %v1151 = vadd.f32 %v1149, %v1150
    %v1152 = vsel %vm1124, %v1144, 0.0
    %v1153 = vrot.slane %v1152, 4
    %v1154 = vadd.f32 %v1152, %v1153
    %v1155 = vrot.slane %v1154, 2
    %v1156 = vadd.f32 %v1154, %v1155
    %v1157 = vrot.slane %v1156, 1
    %v1158 = vadd.f32 %v1156, %v1157
    %v1159 = vrcp.pop %v1151
    %v1160 = vmul.f32 %v1142, %v1159
    %v1161 = vrcp.pop %v1158
    %v1162 = vmul.f32 %v1144, %v1161
    %1164 = vset.pattern.permute.xlu0 0
    %1165 = vperm.xlu0 %1164, %v1160
    %v1166 = vpop.permute.xlu0 %1165
    %1169 = vset.pattern.permute.xlu0 0
    %1170 = vperm.xlu0 %1169, %v1162
    %v1171 = vpop.permute.xlu0 %1170
    %v1173 = vmul.f32 %v32, %v1166
    %v1174 = vmul.f32 %v33, %v1171
    %v1175 = vsel %vm49, %v1173, 0.0
    %v1176 = vrot.slane %v1175, 4
    %v1177 = vadd.f32 %v1175, %v1176
    %v1178 = vrot.slane %v1177, 2
    %v1179 = vadd.f32 %v1177, %v1178
    %v1180 = vrot.slane %v1179, 1
    %v1181 = vadd.f32 %v1179, %v1180
    %v1182 = vsel %vm49, %v1174, 0.0
    %v1183 = vrot.slane %v1182, 4
    %v1184 = vadd.f32 %v1182, %v1183
    %v1185 = vrot.slane %v1184, 2
    %v1186 = vadd.f32 %v1184, %v1185
    %v1187 = vrot.slane %v1186, 1
    %v1188 = vadd.f32 %v1186, %v1187
    %vm1191 = vcmask 1041409
    %v1192 = vsel %vm1191, %v1188, %v1181
    %vm1194 = vcmask 254976
    %1195 = vst.msk [vmem:[#allocation5] sm:$0x3] %vm1194, %v1192
    // Predicated region
    $region22: #{tpu_custom_call.1} parent=1 // pred_check
      _
    $region23: #{tpu_custom_call.1} parent=1 // pred_check_branch
      %1197 = sbr.rel (0) target = $region25
    $region24: #{tpu_custom_call.1} parent=1 // pred_region
      %s1199 = ssub.s32 32, 32
      %1200 = vsyncadd [#allocation4], %s1199
      %s1202 = sshll.u32 [#allocation5], 4
      %s1203 = int_to_ptr.vmem [resolvable:$true] %s1202
      %1205 = dma.vmem_to_hbm [thread:$0]  %s1203, 32, %s4, [#allocation4]
    $region25: #{tpu_custom_call.1} parent=1 // pred_fallthru
      _
    // Predicated region
    $region26: #{tpu_custom_call.1} parent=1 // pred_check
      _
    $region27: #{tpu_custom_call.1} parent=1 // pred_check_branch
      %1207 = sbr.rel (0) target = $region29
    $region28: #{tpu_custom_call.1} parent=1 // pred_region
      %1208 = dma.done [#allocation4], 32
    $region29: #{tpu_custom_call.1} parent=1 // pred_fallthru
      _
    %1209 = vsyncpa [#allocation3], 1
    %1210 = vsyncpa [#allocation4], 1

</llo_original>
